<compile_context>
chip_gen: v6e
topology: v6e:2x2x1
jax: 0.10.0
libtpu: 0.0.40
codegen_flags: <defaults>
</compile_context>

<pallas_src>
import functools

import jax
import jax.numpy as jnp
from jax.experimental import pallas as pl
from jax.experimental.pallas import tpu as pltpu

IN_DIM = 4
HIDDEN = 50
OUT_DIM = 3
LANE = 128          # padded hidden width (lane-dense on the feature axis)
CLS_PAD = 8         # padded class count (sublane-aligned)
NEG_BIG = -1.0e30   # "minus infinity" logit bias for padded class rows (f32-safe)


def _round_up(n, m):
    return ((n + m - 1) // m) * m


def mlp_kernel(xT_ref, w1t_ref, w2t_ref, w3t_ref, b_ref, out_ref):
    # Class-major / batch-in-lanes layout: activations are (features, TB).
    xT = xT_ref[...]                        # (4, TB)    f32
    w1t = w1t_ref[...]                      # (128, 4)   rows >= 50 are zero
    b1 = b_ref[:, 0:1]                      # (128, 1)
    b2 = b_ref[:, 1:2]                      # (128, 1)
    b3 = b_ref[0:CLS_PAD, 2:3]              # (8, 1)     rows >= 3 are -1e30

    # ---- layer 1 on the VPU: K=4 is far too shallow for the MXU --------------
    h1 = (b1
          + w1t[:, 0:1] * xT[0:1, :]
          + w1t[:, 1:2] * xT[1:2, :]
          + w1t[:, 2:3] * xT[2:3, :]
          + w1t[:, 3:4] * xT[3:4, :])       # (128, TB)
    h1 = jnp.maximum(h1, 0.0)

    # ---- layer 2 + relu on the MXU --------------------------------------------
    h2 = jnp.dot(w2t_ref[...], h1, preferred_element_type=jnp.float32) + b2
    h2 = jnp.maximum(h2, 0.0)               # (128, TB)

    # ---- layer 3 (8 class-major rows) + softmax over the class (sublane) axis --
    logits = jnp.dot(w3t_ref[...], h2, preferred_element_type=jnp.float32) + b3  # (8, TB)
    m = jnp.max(logits, axis=0, keepdims=True)        # (1, TB)
    ex = jnp.exp(logits - m)                           # padded class rows -> exp(-1e30) == 0
    inv = 1.0 / jnp.sum(ex, axis=0, keepdims=True)     # exact normalization
    out_ref[...] = ex * inv                            # (8, TB)


def _pad_params(params):
    """Transpose + zero-pad weights to the class-major layout; pack biases into (128, 8)."""
    w1, b1 = params["w1"], params["b1"]   # (4,50), (1,50)
    w2, b2 = params["w2"], params["b2"]   # (50,50), (1,50)
    w3, b3 = params["w3"], params["b3"]   # (50,3), (1,3)

    w1t = jnp.zeros((LANE, IN_DIM), jnp.float32).at[:HIDDEN, :].set(w1.T)
    w2t = jnp.zeros((LANE, LANE), jnp.float32).at[:HIDDEN, :HIDDEN].set(w2.T)
    w3t = jnp.zeros((CLS_PAD, LANE), jnp.float32).at[:OUT_DIM, :HIDDEN].set(w3.T)

    biases = jnp.zeros((LANE, CLS_PAD), jnp.float32)
    biases = biases.at[:HIDDEN, 0].set(b1[0])
    biases = biases.at[:HIDDEN, 1].set(b2[0])
    # padded class rows get a huge negative bias -> softmax prob exactly 0 there
    biases = biases.at[:, 2].set(NEG_BIG)
    biases = biases.at[:OUT_DIM, 2].set(b3[0])
    return w1t, w2t, w3t, biases


@functools.partial(jax.jit, static_argnames=("block_b",))
def iris_mlp_forward(x, params, *, block_b=4096):
    """x: (B, 4) float32; params: dict of w1,b1,w2,b2,w3,b3 in (in, out) layout."""
    w1t, w2t, w3t, biases = _pad_params(params)

    B = x.shape[0]
    # Batch is the lane axis now -> tile must be a multiple of 128.
    tb = min(block_b, _round_up(B, 128))
    # Guarantee >= 2 grid steps when possible so v7x's two TCs both get work.
    if _round_up(B, tb) // tb < 2 and tb > 128:
        tb = max(128, _round_up(tb // 2, 128))
    b_pad = _round_up(B, tb)
    grid = (b_pad // tb,)

    # Wrapper-side layout plumbing: (B,4) -> (4, b_pad); cheap (16 B/row).
    xT = jnp.pad(x.T, ((0, 0), (0, b_pad - B)))

    # Explicit scoped-VMEM budget, scaled with TB and including the in-kernel
    # (128, TB) intermediates (h1/h2 + relu temps, logits/ex/out temporaries).
    tile_bytes = (IN_DIM * tb + CLS_PAD * tb) * 4                       # x tile + out tile
    weight_bytes = (LANE * IN_DIM + LANE * LANE + CLS_PAD * LANE
                    + LANE * CLS_PAD) * 4                               # resident weights+biases
    interm_bytes = (3 * LANE * tb + 4 * CLS_PAD * tb) * 4
    vmem_budget = 2 * tile_bytes + 2 * weight_bytes + interm_bytes + (4 << 20)

    out = pl.pallas_call(
        mlp_kernel,
        out_shape=jax.ShapeDtypeStruct((CLS_PAD, b_pad), jnp.float32),
        grid_spec=pltpu.PrefetchScalarGridSpec(
            num_scalar_prefetch=0,
            grid=grid,
            in_specs=[
                pl.BlockSpec((IN_DIM, tb), lambda i: (0, i)),       # x^T: streams
                pl.BlockSpec((LANE, IN_DIM), lambda i: (0, 0)),     # w1^T: resident
                pl.BlockSpec((LANE, LANE), lambda i: (0, 0)),       # w2^T: resident
                pl.BlockSpec((CLS_PAD, LANE), lambda i: (0, 0)),    # w3^T: resident
                pl.BlockSpec((LANE, CLS_PAD), lambda i: (0, 0)),    # biases: resident
            ],
            out_specs=pl.BlockSpec((CLS_PAD, tb), lambda i: (0, i)),
        ),
        compiler_params=pltpu.CompilerParams(
            dimension_semantics=("parallel",),
            vmem_limit_bytes=int(vmem_budget),
        ),
    )(xT, w1t, w2t, w3t, biases)

    # Cheap extraction: (8, b_pad) -> (3, B) -> (B, 3).
    return out[:OUT_DIM, :B].T


def init_params(key, input_dim=IN_DIM, hidden=HIDDEN, output_dim=OUT_DIM):
    """Deterministic PyTorch-style (Kaiming-uniform-ish) init; weights stored (in, out)."""
    ks = jax.random.split(key, 6)

    def linear(kw, kb, fan_in, fan_out):
        bound = 1.0 / jnp.sqrt(fan_in)
        w = jax.random.uniform(kw, (fan_in, fan_out), jnp.float32, -bound, bound)
        b = jax.random.uniform(kb, (1, fan_out), jnp.float32, -bound, bound)
        return w, b

    w1, b1 = linear(ks[0], ks[1], input_dim, hidden)
    w2, b2 = linear(ks[2], ks[3], hidden, hidden)
    w3, b3 = linear(ks[4], ks[5], hidden, output_dim)
    return {"w1": w1, "b1": b1, "w2": w2, "b2": b2, "w3": w3, "b3": b3}


def reference_forward(x, params):
    h1 = jnp.maximum(x @ params["w1"] + params["b1"], 0.0)
    h2 = jnp.maximum(h1 @ params["w2"] + params["b2"], 0.0)
    return jax.nn.softmax(h2 @ params["w3"] + params["b3"], axis=1)


if __name__ == "__main__":
    key = jax.random.PRNGKey(0)
    k_params, k_x = jax.random.split(key)

    params = init_params(k_params)

    # Small deterministic batch of iris-like samples: (8, 4).
    x = jax.random.normal(k_x, (8, IN_DIM), dtype=jnp.float32)

    out = iris_mlp_forward(x, params)
    out = jax.block_until_ready(out)

    assert out.shape == (8, OUT_DIM)
    assert jnp.allclose(jnp.sum(out, axis=1), 1.0, atol=1e-5)
    ref = reference_forward(x, params)
    assert jnp.allclose(out, ref, atol=1e-5)

    # Second tiny check: exercises batch padding and a multi-step grid (>=2 tiles).
    x2 = jax.random.normal(jax.random.PRNGKey(1), (300, IN_DIM), dtype=jnp.float32)
    out2 = jax.block_until_ready(iris_mlp_forward(x2, params))
    assert out2.shape == (300, OUT_DIM)
    assert jnp.allclose(out2, reference_forward(x2, params), atol=1e-5)

    print("KERNEL_OK")
</pallas_src>

<mosaic_0001>
module attributes {stable_mosaic.version = 11 : i64} {
  func.func @mlp_kernel(%arg0: i32, %arg1: memref<4x128xf32, #tpu.memory_space<vmem>>, %arg2: memref<128x4xf32, #tpu.memory_space<vmem>>, %arg3: memref<128x128xf32, #tpu.memory_space<vmem>>, %arg4: memref<8x128xf32, #tpu.memory_space<vmem>>, %arg5: memref<128x8xf32, #tpu.memory_space<vmem>>, %arg6: memref<8x128xf32, #tpu.memory_space<vmem>>) attributes {dimension_semantics = [#tpu.dimension_semantics<parallel>], iteration_bounds = array<i64: 1>, scalar_prefetch = 0 : i64, scratch_operands = 0 : i64, tpu.core_type = #tpu.core_type<tc>, window_params = [{transform_indices = @transform_0, window_bounds = array<i64: 4, 128>}, {pipeline_mode = #tpu.pipeline_mode<synchronous>, transform_indices = @transform_1, window_bounds = array<i64: 128, 4>}, {pipeline_mode = #tpu.pipeline_mode<synchronous>, transform_indices = @transform_2, window_bounds = array<i64: 128, 128>}, {pipeline_mode = #tpu.pipeline_mode<synchronous>, transform_indices = @transform_3, window_bounds = array<i64: 8, 128>}, {pipeline_mode = #tpu.pipeline_mode<synchronous>, transform_indices = @transform_4, window_bounds = array<i64: 128, 8>}, {transform_indices = @transform_5, window_bounds = array<i64: 8, 128>}]} {
    %c0 = arith.constant 0 : index
    %c0_0 = arith.constant 0 : index
    %0 = vector.load %arg1[%c0, %c0_0] : memref<4x128xf32, #tpu.memory_space<vmem>>, vector<4x128xf32>
    %c0_1 = arith.constant 0 : index
    %c0_2 = arith.constant 0 : index
    %1 = vector.load %arg2[%c0_1, %c0_2] : memref<128x4xf32, #tpu.memory_space<vmem>>, vector<128x4xf32>
    %c0_3 = arith.constant 0 : index
    %c0_4 = arith.constant 0 : index
    %2 = vector.load %arg5[%c0_3, %c0_4] : memref<128x8xf32, #tpu.memory_space<vmem>>, vector<128x1xf32>
    %c0_5 = arith.constant 0 : index
    %c1 = arith.constant 1 : index
    %3 = vector.load %arg5[%c0_5, %c1] : memref<128x8xf32, #tpu.memory_space<vmem>>, vector<128x1xf32>
    %c0_6 = arith.constant 0 : index
    %c2 = arith.constant 2 : index
    %4 = vector.load %arg5[%c0_6, %c2] : memref<128x8xf32, #tpu.memory_space<vmem>>, vector<8x1xf32>
    %5 = vector.extract_strided_slice %1 {offsets = [0, 0], sizes = [128, 1], strides = [1, 1]} : vector<128x4xf32> to vector<128x1xf32>
    %6 = vector.extract_strided_slice %0 {offsets = [0, 0], sizes = [1, 128], strides = [1, 1]} : vector<4x128xf32> to vector<1x128xf32>
    %7 = vector.broadcast %5 : vector<128x1xf32> to vector<128x128xf32>
    %8 = vector.broadcast %6 : vector<1x128xf32> to vector<128x128xf32>
    %9 = arith.mulf %7, %8 : vector<128x128xf32>
    %10 = vector.broadcast %2 : vector<128x1xf32> to vector<128x128xf32>
    %11 = arith.addf %10, %9 : vector<128x128xf32>
    %12 = vector.extract_strided_slice %1 {offsets = [0, 1], sizes = [128, 1], strides = [1, 1]} : vector<128x4xf32> to vector<128x1xf32>
    %13 = vector.extract_strided_slice %0 {offsets = [1, 0], sizes = [1, 128], strides = [1, 1]} : vector<4x128xf32> to vector<1x128xf32>
    %14 = vector.broadcast %12 : vector<128x1xf32> to vector<128x128xf32>
    %15 = vector.broadcast %13 : vector<1x128xf32> to vector<128x128xf32>
    %16 = arith.mulf %14, %15 : vector<128x128xf32>
    %17 = arith.addf %11, %16 : vector<128x128xf32>
    %18 = vector.extract_strided_slice %1 {offsets = [0, 2], sizes = [128, 1], strides = [1, 1]} : vector<128x4xf32> to vector<128x1xf32>
    %19 = vector.extract_strided_slice %0 {offsets = [2, 0], sizes = [1, 128], strides = [1, 1]} : vector<4x128xf32> to vector<1x128xf32>
    %20 = vector.broadcast %18 : vector<128x1xf32> to vector<128x128xf32>
    %21 = vector.broadcast %19 : vector<1x128xf32> to vector<128x128xf32>
    %22 = arith.mulf %20, %21 : vector<128x128xf32>
    %23 = arith.addf %17, %22 : vector<128x128xf32>
    %24 = vector.extract_strided_slice %1 {offsets = [0, 3], sizes = [128, 1], strides = [1, 1]} : vector<128x4xf32> to vector<128x1xf32>
    %25 = vector.extract_strided_slice %0 {offsets = [3, 0], sizes = [1, 128], strides = [1, 1]} : vector<4x128xf32> to vector<1x128xf32>
    %26 = vector.broadcast %24 : vector<128x1xf32> to vector<128x128xf32>
    %27 = vector.broadcast %25 : vector<1x128xf32> to vector<128x128xf32>
    %28 = arith.mulf %26, %27 : vector<128x128xf32>
    %29 = arith.addf %23, %28 : vector<128x128xf32>
    %cst = arith.constant 0.000000e+00 : f32
    %30 = vector.broadcast %cst : f32 to vector<128x128xf32>
    %31 = arith.maximumf %29, %30 : vector<128x128xf32>
    %c0_7 = arith.constant 0 : index
    %c0_8 = arith.constant 0 : index
    %32 = vector.load %arg3[%c0_7, %c0_8] : memref<128x128xf32, #tpu.memory_space<vmem>>, vector<128x128xf32>
    %cst_9 = arith.constant dense<0.000000e+00> : vector<128x128xf32>
    %33 = tpu.matmul %32, %31, %cst_9 {dimension_numbers = #tpu.dot_dimension_numbers<[1], [0], [0], [1], [0, 0, 1, 1], [], []>} : vector<128x128xf32>, vector<128x128xf32>, vector<128x128xf32> -> vector<128x128xf32>
    %34 = vector.broadcast %3 : vector<128x1xf32> to vector<128x128xf32>
    %35 = arith.addf %33, %34 : vector<128x128xf32>
    %cst_10 = arith.constant 0.000000e+00 : f32
    %36 = vector.broadcast %cst_10 : f32 to vector<128x128xf32>
    %37 = arith.maximumf %35, %36 : vector<128x128xf32>
    %c0_11 = arith.constant 0 : index
    %c0_12 = arith.constant 0 : index
    %38 = vector.load %arg4[%c0_11, %c0_12] : memref<8x128xf32, #tpu.memory_space<vmem>>, vector<8x128xf32>
    %cst_13 = arith.constant dense<0.000000e+00> : vector<8x128xf32>
    %39 = tpu.matmul %38, %37, %cst_13 {dimension_numbers = #tpu.dot_dimension_numbers<[1], [0], [0], [1], [0, 0, 1, 1], [], []>} : vector<8x128xf32>, vector<128x128xf32>, vector<8x128xf32> -> vector<8x128xf32>
    %40 = vector.broadcast %4 : vector<8x1xf32> to vector<8x128xf32>
    %41 = arith.addf %39, %40 : vector<8x128xf32>
    %cst_14 = arith.constant dense<0xFF800000> : vector<128xf32>
    %42 = vector.multi_reduction <maximumf>, %41, %cst_14 [0] : vector<8x128xf32> to vector<128xf32>
    %43 = vector.shape_cast %42 : vector<128xf32> to vector<1x128xf32>
    %44 = vector.broadcast %43 : vector<1x128xf32> to vector<8x128xf32>
    %45 = arith.subf %41, %44 : vector<8x128xf32>
    %46 = math.exp %45 : vector<8x128xf32>
    %cst_15 = arith.constant dense<0.000000e+00> : vector<128xf32>
    %47 = vector.multi_reduction <add>, %46, %cst_15 [0] : vector<8x128xf32> to vector<128xf32>
    %48 = vector.shape_cast %47 : vector<128xf32> to vector<1x128xf32>
    %cst_16 = arith.constant 1.000000e+00 : f32
    %49 = vector.broadcast %cst_16 : f32 to vector<1x128xf32>
    %50 = arith.divf %49, %48 : vector<1x128xf32>
    %51 = vector.broadcast %50 : vector<1x128xf32> to vector<8x128xf32>
    %52 = arith.mulf %46, %51 : vector<8x128xf32>
    %c0_17 = arith.constant 0 : index
    %c0_18 = arith.constant 0 : index
    %53 = vector.load %arg6[%c0_17, %c0_18] : memref<8x128xf32, #tpu.memory_space<vmem>>, vector<8x128xf32>
    tpu.vector_store %arg6[%c0_17, %c0_18], %52 {strides = array<i32>} : memref<8x128xf32, #tpu.memory_space<vmem>>, vector<8x128xf32>,
    return
  }
  func.func @transform_0(%arg0: i32) -> (i32, i32) {
    %c0_i32 = arith.constant 0 : i32
    %c0_i32_0 = arith.constant 0 : i32
    return %c0_i32, %arg0 : i32, i32
  }
  func.func @transform_1(%arg0: i32) -> (i32, i32) {
    %c0_i32 = arith.constant 0 : i32
    %c0_i32_0 = arith.constant 0 : i32
    %c0_i32_1 = arith.constant 0 : i32
    return %c0_i32, %c0_i32_0 : i32, i32
  }
  func.func @transform_2(%arg0: i32) -> (i32, i32) {
    %c0_i32 = arith.constant 0 : i32
    %c0_i32_0 = arith.constant 0 : i32
    %c0_i32_1 = arith.constant 0 : i32
    return %c0_i32, %c0_i32_0 : i32, i32
  }
  func.func @transform_3(%arg0: i32) -> (i32, i32) {
    %c0_i32 = arith.constant 0 : i32
    %c0_i32_0 = arith.constant 0 : i32
    %c0_i32_1 = arith.constant 0 : i32
    return %c0_i32, %c0_i32_0 : i32, i32
  }
  func.func @transform_4(%arg0: i32) -> (i32, i32) {
    %c0_i32 = arith.constant 0 : i32
    %c0_i32_0 = arith.constant 0 : i32
    %c0_i32_1 = arith.constant 0 : i32
    return %c0_i32, %c0_i32_0 : i32, i32
  }
  func.func @transform_5(%arg0: i32) -> (i32, i32) {
    %c0_i32 = arith.constant 0 : i32
    %c0_i32_0 = arith.constant 0 : i32
    return %c0_i32, %arg0 : i32, i32
  }
}

</mosaic_0001>

<llo_original>
// kernel: iris_mlp_forward.1
$region0: #{iris_mlp_forward.1}
  #allocation0 [shape = 'u32[]', space=smem, size = 0x4, offset = 0x4, fixed_abs, tag = 'smem constant byte address 0x4 - core index']
  #allocation1 [shape = 'u32[144,128]{1,0:T(1,128)}', space=vmem, size = 0x12000, scoped, tag = 'internal scratch']
  %s0 = inlined_call_operand.vmem [shape: f32[4,128], index: 0, kind: input, shape index: {}]
  %s1 = inlined_call_operand.vmem [shape: f32[128,4], index: 1, kind: input, shape index: {}]
  %s2 = inlined_call_operand.vmem [shape: f32[128,128], index: 2, kind: input, shape index: {}]
  %s3 = inlined_call_operand.vmem [shape: f32[8,128], index: 3, kind: input, shape index: {}]
  %s4 = inlined_call_operand.vmem [shape: f32[128,8], index: 4, kind: input, shape index: {}]
  %s5 = inlined_call_operand.vmem [shape: f32[8,128], index: 5, kind: output, shape index: {}]
  %s6 = sld [smem:[#allocation0]]
  $region30: #{iris_mlp_forward.1} parent=0
    _
  %s8 = ssub.s32 1, %s6
  %s9 = scalar_select 0, %s8, %s6
  // Predicated region
  $region2: #{iris_mlp_forward.1} parent=0 // pred_check
    _
  $region3: #{iris_mlp_forward.1} parent=0 // pred_check_branch
    %11 = sbr.rel (0) target = $region5
  $region4: #{iris_mlp_forward.1} parent=0 // pred_region
    _
  $region5: #{iris_mlp_forward.1} parent=0 // pred_fallthru
    _
  // Predicated region
  $region6: #{iris_mlp_forward.1} parent=0 // pred_check
    _
  $region7: #{iris_mlp_forward.1} parent=0 // pred_check_branch
    %13 = sbr.rel (0) target = $region9
  $region8: #{iris_mlp_forward.1} parent=0 // pred_region
    _
  $region9: #{iris_mlp_forward.1} parent=0 // pred_fallthru
    _
  // Predicated region
  $region10: #{iris_mlp_forward.1} parent=0 // pred_check
    _
  $region11: #{iris_mlp_forward.1} parent=0 // pred_check_branch
    %15 = sbr.rel (0) target = $region13
  $region12: #{iris_mlp_forward.1} parent=0 // pred_region
    _
  $region13: #{iris_mlp_forward.1} parent=0 // pred_fallthru
    _
  // Predicated region
  $region14: #{iris_mlp_forward.1} parent=0 // pred_check
    _
  $region15: #{iris_mlp_forward.1} parent=0 // pred_check_branch
    %17 = sbr.rel (0) target = $region17
  $region16: #{iris_mlp_forward.1} parent=0 // pred_region
    _
  $region17: #{iris_mlp_forward.1} parent=0 // pred_fallthru
    _
  // Predicated region
  $region18: #{iris_mlp_forward.1} parent=0 // pred_check
    _
  $region19: #{iris_mlp_forward.1} parent=0 // pred_check_branch
    %19 = sbr.rel (0) target = $region21
  $region20: #{iris_mlp_forward.1} parent=0 // pred_region
    _
  $region21: #{iris_mlp_forward.1} parent=0 // pred_fallthru
    _
  %v20 = vld [vmem:[%s0] sm:$0xf]
  %v21 = vld [vmem:[%s1] sm:$0xff]
  %v22 = vld [vmem:[%s1 + $0x8] sm:$0xff]
  %v23 = vld [vmem:[%s1 + $0x10] sm:$0xff]
  %v24 = vld [vmem:[%s1 + $0x18] sm:$0xff]
  %v25 = vld [vmem:[%s1 + $0x20] sm:$0xff]
  %v26 = vld [vmem:[%s1 + $0x28] sm:$0xff]
  %v27 = vld [vmem:[%s1 + $0x30] sm:$0xff]
  %v28 = vld [vmem:[%s1 + $0x38] sm:$0xff]
  %v29 = vld [vmem:[%s1 + $0x40] sm:$0xff]
  %v30 = vld [vmem:[%s1 + $0x48] sm:$0xff]
  %v31 = vld [vmem:[%s1 + $0x50] sm:$0xff]
  %v32 = vld [vmem:[%s1 + $0x58] sm:$0xff]
  %v33 = vld [vmem:[%s1 + $0x60] sm:$0xff]
  %v34 = vld [vmem:[%s1 + $0x68] sm:$0xff]
  %v35 = vld [vmem:[%s1 + $0x70] sm:$0xff]
  %v36 = vld [vmem:[%s1 + $0x78] sm:$0xff]
  %v37 = vld [vmem:[%s4] sm:$0xff]
  %v38 = vld [vmem:[%s4 + $0x8] sm:$0xff]
  %v39 = vld [vmem:[%s4 + $0x10] sm:$0xff]
  %v40 = vld [vmem:[%s4 + $0x18] sm:$0xff]
  %v41 = vld [vmem:[%s4 + $0x20] sm:$0xff]
  %v42 = vld [vmem:[%s4 + $0x28] sm:$0xff]
  %v43 = vld [vmem:[%s4 + $0x30] sm:$0xff]
  %v44 = vld [vmem:[%s4 + $0x38] sm:$0xff]
  %v45 = vld [vmem:[%s4 + $0x40] sm:$0xff]
  %v46 = vld [vmem:[%s4 + $0x48] sm:$0xff]
  %v47 = vld [vmem:[%s4 + $0x50] sm:$0xff]
  %v48 = vld [vmem:[%s4 + $0x58] sm:$0xff]
  %v49 = vld [vmem:[%s4 + $0x60] sm:$0xff]
  %v50 = vld [vmem:[%s4 + $0x68] sm:$0xff]
  %v51 = vld [vmem:[%s4 + $0x70] sm:$0xff]
  %v52 = vld [vmem:[%s4 + $0x78] sm:$0xff]
  %54 = vset.pattern.permute.xlu0 0
  %55 = vperm.xlu0 %54, %v21
  %v56 = vpop.permute.xlu0 %55
  %59 = vset.pattern.permute.xlu0 0
  %60 = vperm.xlu0 %59, %v22
  %v61 = vpop.permute.xlu0 %60
  %64 = vset.pattern.permute.xlu0 0
  %65 = vperm.xlu0 %64, %v23
  %v66 = vpop.permute.xlu0 %65
  %69 = vset.pattern.permute.xlu0 0
  %70 = vperm.xlu0 %69, %v24
  %v71 = vpop.permute.xlu0 %70
  %74 = vset.pattern.permute.xlu0 0
  %75 = vperm.xlu0 %74, %v25
  %v76 = vpop.permute.xlu0 %75
  %79 = vset.pattern.permute.xlu0 0
  %80 = vperm.xlu0 %79, %v26
  %v81 = vpop.permute.xlu0 %80
  %84 = vset.pattern.permute.xlu0 0
  %85 = vperm.xlu0 %84, %v27
  %v86 = vpop.permute.xlu0 %85
  %89 = vset.pattern.permute.xlu0 0
  %90 = vperm.xlu0 %89, %v28
  %v91 = vpop.permute.xlu0 %90
  %94 = vset.pattern.permute.xlu0 0
  %95 = vperm.xlu0 %94, %v29
  %v96 = vpop.permute.xlu0 %95
  %99 = vset.pattern.permute.xlu0 0
  %100 = vperm.xlu0 %99, %v30
  %v101 = vpop.permute.xlu0 %100
  %104 = vset.pattern.permute.xlu0 0
  %105 = vperm.xlu0 %104, %v31
  %v106 = vpop.permute.xlu0 %105
  %109 = vset.pattern.permute.xlu0 0
  %110 = vperm.xlu0 %109, %v32
  %v111 = vpop.permute.xlu0 %110
  %114 = vset.pattern.permute.xlu0 0
  %115 = vperm.xlu0 %114, %v33
  %v116 = vpop.permute.xlu0 %115
  %119 = vset.pattern.permute.xlu0 0
  %120 = vperm.xlu0 %119, %v34
  %v121 = vpop.permute.xlu0 %120
  %124 = vset.pattern.permute.xlu0 0
  %125 = vperm.xlu0 %124, %v35
  %v126 = vpop.permute.xlu0 %125
  %129 = vset.pattern.permute.xlu0 0
  %130 = vperm.xlu0 %129, %v36
  %v131 = vpop.permute.xlu0 %130
  %v133 = vlaneseq
  %v134 = vshrl.u32 %v133, 7
  %v135 = vsub.s32 0, %v134
  %v136 = vrot.slane %v20, %v135
  %v137 = vmul.f32 %v56, %v136
  %v138 = vmul.f32 %v61, %v136
  %v139 = vmul.f32 %v66, %v136
  %v140 = vmul.f32 %v71, %v136
  %v141 = vmul.f32 %v76, %v136
  %v142 = vmul.f32 %v81, %v136
  %v143 = vmul.f32 %v86, %v136
  %v144 = vmul.f32 %v91, %v136
  %v145 = vmul.f32 %v96, %v136
  %v146 = vmul.f32 %v101, %v136
  %v147 = vmul.f32 %v106, %v136
  %v148 = vmul.f32 %v111, %v136
  %v149 = vmul.f32 %v116, %v136
  %v150 = vmul.f32 %v121, %v136
  %v151 = vmul.f32 %v126, %v136
  %v152 = vmul.f32 %v131, %v136
  %154 = vset.pattern.permute.xlu0 0
  %155 = vperm.xlu0 %154, %v37
  %v156 = vpop.permute.xlu0 %155
  %159 = vset.pattern.permute.xlu0 0
  %160 = vperm.xlu0 %159, %v38
  %v161 = vpop.permute.xlu0 %160
  %164 = vset.pattern.permute.xlu0 0
  %165 = vperm.xlu0 %164, %v39
  %v166 = vpop.permute.xlu0 %165
  %169 = vset.pattern.permute.xlu0 0
  %170 = vperm.xlu0 %169, %v40
  %v171 = vpop.permute.xlu0 %170
  %174 = vset.pattern.permute.xlu0 0
  %175 = vperm.xlu0 %174, %v41
  %v176 = vpop.permute.xlu0 %175
  %179 = vset.pattern.permute.xlu0 0
  %180 = vperm.xlu0 %179, %v42
  %v181 = vpop.permute.xlu0 %180
  %184 = vset.pattern.permute.xlu0 0
  %185 = vperm.xlu0 %184, %v43
  %v186 = vpop.permute.xlu0 %185
  %189 = vset.pattern.permute.xlu0 0
  %190 = vperm.xlu0 %189, %v44
  %v191 = vpop.permute.xlu0 %190
  %194 = vset.pattern.permute.xlu0 0
  %195 = vperm.xlu0 %194, %v45
  %v196 = vpop.permute.xlu0 %195
  %199 = vset.pattern.permute.xlu0 0
  %200 = vperm.xlu0 %199, %v46
  %v201 = vpop.permute.xlu0 %200
  %204 = vset.pattern.permute.xlu0 0
  %205 = vperm.xlu0 %204, %v47
  %v206 = vpop.permute.xlu0 %205
  %209 = vset.pattern.permute.xlu0 0
  %210 = vperm.xlu0 %209, %v48
  %v211 = vpop.permute.xlu0 %210
  %214 = vset.pattern.permute.xlu0 0
  %215 = vperm.xlu0 %214, %v49
  %v216 = vpop.permute.xlu0 %215
  %219 = vset.pattern.permute.xlu0 0
  %220 = vperm.xlu0 %219, %v50
  %v221 = vpop.permute.xlu0 %220
  %224 = vset.pattern.permute.xlu0 0
  %225 = vperm.xlu0 %224, %v51
  %v226 = vpop.permute.xlu0 %225
  %229 = vset.pattern.permute.xlu0 0
  %230 = vperm.xlu0 %229, %v52
  %v231 = vpop.permute.xlu0 %230
  %v233 = vadd.f32 %v156, %v137
  %v234 = vadd.f32 %v161, %v138
  %v235 = vadd.f32 %v166, %v139
  %v236 = vadd.f32 %v171, %v140
  %v237 = vadd.f32 %v176, %v141
  %v238 = vadd.f32 %v181, %v142
  %v239 = vadd.f32 %v186, %v143
  %v240 = vadd.f32 %v191, %v144
  %v241 = vadd.f32 %v196, %v145
  %v242 = vadd.f32 %v201, %v146
  %v243 = vadd.f32 %v206, %v147
  %v244 = vadd.f32 %v211, %v148
  %v245 = vadd.f32 %v216, %v149
  %v246 = vadd.f32 %v221, %v150
  %v247 = vadd.f32 %v226, %v151
  %v248 = vadd.f32 %v231, %v152
  %249 = vset.pattern.permute.xlu0 1
  %250 = vperm.xlu0 %249, %v21
  %v251 = vpop.permute.xlu0 %250
  %253 = vset.pattern.permute.xlu0 1
  %254 = vperm.xlu0 %253, %v22
  %v255 = vpop.permute.xlu0 %254
  %257 = vset.pattern.permute.xlu0 1
  %258 = vperm.xlu0 %257, %v23
  %v259 = vpop.permute.xlu0 %258
  %261 = vset.pattern.permute.xlu0 1
  %262 = vperm.xlu0 %261, %v24
  %v263 = vpop.permute.xlu0 %262
  %265 = vset.pattern.permute.xlu0 1
  %266 = vperm.xlu0 %265, %v25
  %v267 = vpop.permute.xlu0 %266
  %269 = vset.pattern.permute.xlu0 1
  %270 = vperm.xlu0 %269, %v26
  %v271 = vpop.permute.xlu0 %270
  %273 = vset.pattern.permute.xlu0 1
  %274 = vperm.xlu0 %273, %v27
  %v275 = vpop.permute.xlu0 %274
  %277 = vset.pattern.permute.xlu0 1
  %278 = vperm.xlu0 %277, %v28
  %v279 = vpop.permute.xlu0 %278
  %281 = vset.pattern.permute.xlu0 1
  %282 = vperm.xlu0 %281, %v29
  %v283 = vpop.permute.xlu0 %282
  %285 = vset.pattern.permute.xlu0 1
  %286 = vperm.xlu0 %285, %v30
  %v287 = vpop.permute.xlu0 %286
  %289 = vset.pattern.permute.xlu0 1
  %290 = vperm.xlu0 %289, %v31
  %v291 = vpop.permute.xlu0 %290
  %293 = vset.pattern.permute.xlu0 1
  %294 = vperm.xlu0 %293, %v32
  %v295 = vpop.permute.xlu0 %294
  %297 = vset.pattern.permute.xlu0 1
  %298 = vperm.xlu0 %297, %v33
  %v299 = vpop.permute.xlu0 %298
  %301 = vset.pattern.permute.xlu0 1
  %302 = vperm.xlu0 %301, %v34
  %v303 = vpop.permute.xlu0 %302
  %305 = vset.pattern.permute.xlu0 1
  %306 = vperm.xlu0 %305, %v35
  %v307 = vpop.permute.xlu0 %306
  %309 = vset.pattern.permute.xlu0 1
  %310 = vperm.xlu0 %309, %v36
  %v311 = vpop.permute.xlu0 %310
  %v313 = vlaneseq
  %v314 = vshrl.u32 %v313, 7
  %v315 = vsub.s32 1, %v314
  %v316 = vrot.slane %v20, %v315
  %v317 = vmul.f32 %v251, %v316
  %v318 = vmul.f32 %v255, %v316
  %v319 = vmul.f32 %v259, %v316
  %v320 = vmul.f32 %v263, %v316
  %v321 = vmul.f32 %v267, %v316
  %v322 = vmul.f32 %v271, %v316
  %v323 = vmul.f32 %v275, %v316
  %v324 = vmul.f32 %v279, %v316
  %v325 = vmul.f32 %v283, %v316
  %v326 = vmul.f32 %v287, %v316
  %v327 = vmul.f32 %v291, %v316
  %v328 = vmul.f32 %v295, %v316
  %v329 = vmul.f32 %v299, %v316
  %v330 = vmul.f32 %v303, %v316
  %v331 = vmul.f32 %v307, %v316
  %v332 = vmul.f32 %v311, %v316
  %v333 = vadd.f32 %v233, %v317
  %v334 = vadd.f32 %v234, %v318
  %v335 = vadd.f32 %v235, %v319
  %v336 = vadd.f32 %v236, %v320
  %v337 = vadd.f32 %v237, %v321
  %v338 = vadd.f32 %v238, %v322
  %v339 = vadd.f32 %v239, %v323
  %v340 = vadd.f32 %v240, %v324
  %v341 = vadd.f32 %v241, %v325
  %v342 = vadd.f32 %v242, %v326
  %v343 = vadd.f32 %v243, %v327
  %v344 = vadd.f32 %v244, %v328
  %v345 = vadd.f32 %v245, %v329
  %v346 = vadd.f32 %v246, %v330
  %v347 = vadd.f32 %v247, %v331
  %v348 = vadd.f32 %v248, %v332
  %349 = vset.pattern.permute.xlu0 2
  %350 = vperm.xlu0 %349, %v21
  %v351 = vpop.permute.xlu0 %350
  %353 = vset.pattern.permute.xlu0 2
  %354 = vperm.xlu0 %353, %v22
  %v355 = vpop.permute.xlu0 %354
  %357 = vset.pattern.permute.xlu0 2
  %358 = vperm.xlu0 %357, %v23
  %v359 = vpop.permute.xlu0 %358
  %361 = vset.pattern.permute.xlu0 2
  %362 = vperm.xlu0 %361, %v24
  %v363 = vpop.permute.xlu0 %362
  %365 = vset.pattern.permute.xlu0 2
  %366 = vperm.xlu0 %365, %v25
  %v367 = vpop.permute.xlu0 %366
  %369 = vset.pattern.permute.xlu0 2
  %370 = vperm.xlu0 %369, %v26
  %v371 = vpop.permute.xlu0 %370
  %373 = vset.pattern.permute.xlu0 2
  %374 = vperm.xlu0 %373, %v27
  %v375 = vpop.permute.xlu0 %374
  %377 = vset.pattern.permute.xlu0 2
  %378 = vperm.xlu0 %377, %v28
  %v379 = vpop.permute.xlu0 %378
  %381 = vset.pattern.permute.xlu0 2
  %382 = vperm.xlu0 %381, %v29
  %v383 = vpop.permute.xlu0 %382
  %385 = vset.pattern.permute.xlu0 2
  %386 = vperm.xlu0 %385, %v30
  %v387 = vpop.permute.xlu0 %386
  %389 = vset.pattern.permute.xlu0 2
  %390 = vperm.xlu0 %389, %v31
  %v391 = vpop.permute.xlu0 %390
  %393 = vset.pattern.permute.xlu0 2
  %394 = vperm.xlu0 %393, %v32
  %v395 = vpop.permute.xlu0 %394
  %397 = vset.pattern.permute.xlu0 2
  %398 = vperm.xlu0 %397, %v33
  %v399 = vpop.permute.xlu0 %398
  %401 = vset.pattern.permute.xlu0 2
  %402 = vperm.xlu0 %401, %v34
  %v403 = vpop.permute.xlu0 %402
  %405 = vset.pattern.permute.xlu0 2
  %406 = vperm.xlu0 %405, %v35
  %v407 = vpop.permute.xlu0 %406
  %409 = vset.pattern.permute.xlu0 2
  %410 = vperm.xlu0 %409, %v36
  %v411 = vpop.permute.xlu0 %410
  %v413 = vlaneseq
  %v414 = vshrl.u32 %v413, 7
  %v415 = vsub.s32 2, %v414
  %v416 = vrot.slane %v20, %v415
  %v417 = vmul.f32 %v351, %v416
  %v418 = vmul.f32 %v355, %v416
  %v419 = vmul.f32 %v359, %v416
  %v420 = vmul.f32 %v363, %v416
  %v421 = vmul.f32 %v367, %v416
  %v422 = vmul.f32 %v371, %v416
  %v423 = vmul.f32 %v375, %v416
  %v424 = vmul.f32 %v379, %v416
  %v425 = vmul.f32 %v383, %v416
  %v426 = vmul.f32 %v387, %v416
  %v427 = vmul.f32 %v391, %v416
  %v428 = vmul.f32 %v395, %v416
  %v429 = vmul.f32 %v399, %v416
  %v430 = vmul.f32 %v403, %v416
  %v431 = vmul.f32 %v407, %v416
  %v432 = vmul.f32 %v411, %v416
  %v433 = vadd.f32 %v333, %v417
  %v434 = vadd.f32 %v334, %v418
  %v435 = vadd.f32 %v335, %v419
  %v436 = vadd.f32 %v336, %v420
  %v437 = vadd.f32 %v337, %v421
  %v438 = vadd.f32 %v338, %v422
  %v439 = vadd.f32 %v339, %v423
  %v440 = vadd.f32 %v340, %v424
  %v441 = vadd.f32 %v341, %v425
  %v442 = vadd.f32 %v342, %v426
  %v443 = vadd.f32 %v343, %v427
  %v444 = vadd.f32 %v344, %v428
  %v445 = vadd.f32 %v345, %v429
  %v446 = vadd.f32 %v346, %v430
  %v447 = vadd.f32 %v347, %v431
  %v448 = vadd.f32 %v348, %v432
  %449 = vset.pattern.permute.xlu0 3
  %450 = vperm.xlu0 %449, %v21
  %v451 = vpop.permute.xlu0 %450
  %453 = vset.pattern.permute.xlu0 3
  %454 = vperm.xlu0 %453, %v22
  %v455 = vpop.permute.xlu0 %454
  %457 = vset.pattern.permute.xlu0 3
  %458 = vperm.xlu0 %457, %v23
  %v459 = vpop.permute.xlu0 %458
  %461 = vset.pattern.permute.xlu0 3
  %462 = vperm.xlu0 %461, %v24
  %v463 = vpop.permute.xlu0 %462
  %465 = vset.pattern.permute.xlu0 3
  %466 = vperm.xlu0 %465, %v25
  %v467 = vpop.permute.xlu0 %466
  %469 = vset.pattern.permute.xlu0 3
  %470 = vperm.xlu0 %469, %v26
  %v471 = vpop.permute.xlu0 %470
  %473 = vset.pattern.permute.xlu0 3
  %474 = vperm.xlu0 %473, %v27
  %v475 = vpop.permute.xlu0 %474
  %477 = vset.pattern.permute.xlu0 3
  %478 = vperm.xlu0 %477, %v28
  %v479 = vpop.permute.xlu0 %478
  %481 = vset.pattern.permute.xlu0 3
  %482 = vperm.xlu0 %481, %v29
  %v483 = vpop.permute.xlu0 %482
  %485 = vset.pattern.permute.xlu0 3
  %486 = vperm.xlu0 %485, %v30
  %v487 = vpop.permute.xlu0 %486
  %489 = vset.pattern.permute.xlu0 3
  %490 = vperm.xlu0 %489, %v31
  %v491 = vpop.permute.xlu0 %490
  %493 = vset.pattern.permute.xlu0 3
  %494 = vperm.xlu0 %493, %v32
  %v495 = vpop.permute.xlu0 %494
  %497 = vset.pattern.permute.xlu0 3
  %498 = vperm.xlu0 %497, %v33
  %v499 = vpop.permute.xlu0 %498
  %501 = vset.pattern.permute.xlu0 3
  %502 = vperm.xlu0 %501, %v34
  %v503 = vpop.permute.xlu0 %502
  %505 = vset.pattern.permute.xlu0 3
  %506 = vperm.xlu0 %505, %v35
  %v507 = vpop.permute.xlu0 %506
  %509 = vset.pattern.permute.xlu0 3
  %510 = vperm.xlu0 %509, %v36
  %v511 = vpop.permute.xlu0 %510
  %v513 = vlaneseq
  %v514 = vshrl.u32 %v513, 7
  %v515 = vsub.s32 3, %v514
  %v516 = vrot.slane %v20, %v515
  %v517 = vmul.f32 %v451, %v516
  %v518 = vmul.f32 %v455, %v516
  %v519 = vmul.f32 %v459, %v516
  %v520 = vmul.f32 %v463, %v516
  %v521 = vmul.f32 %v467, %v516
  %v522 = vmul.f32 %v471, %v516
  %v523 = vmul.f32 %v475, %v516
  %v524 = vmul.f32 %v479, %v516
  %v525 = vmul.f32 %v483, %v516
  %v526 = vmul.f32 %v487, %v516
  %v527 = vmul.f32 %v491, %v516
  %v528 = vmul.f32 %v495, %v516
  %v529 = vmul.f32 %v499, %v516
  %v530 = vmul.f32 %v503, %v516
  %v531 = vmul.f32 %v507, %v516
  %v532 = vmul.f32 %v511, %v516
  %v533 = vadd.f32 %v433, %v517
  %v534 = vadd.f32 %v434, %v518
  %v535 = vadd.f32 %v435, %v519
  %v536 = vadd.f32 %v436, %v520
  %v537 = vadd.f32 %v437, %v521
  %v538 = vadd.f32 %v438, %v522
  %v539 = vadd.f32 %v439, %v523
  %v540 = vadd.f32 %v440, %v524
  %v541 = vadd.f32 %v441, %v525
  %v542 = vadd.f32 %v442, %v526
  %v543 = vadd.f32 %v443, %v527
  %v544 = vadd.f32 %v444, %v528
  %v545 = vadd.f32 %v445, %v529
  %v546 = vadd.f32 %v446, %v530
  %v547 = vadd.f32 %v447, %v531
  %v548 = vadd.f32 %v448, %v532
  %v549 = vmax.f32 %v533, 0.0
  %v550 = vmax.f32 %v534, 0.0
  %v551 = vmax.f32 %v535, 0.0
  %v552 = vmax.f32 %v536, 0.0
  %v553 = vmax.f32 %v537, 0.0
  %v554 = vmax.f32 %v538, 0.0
  %v555 = vmax.f32 %v539, 0.0
  %v556 = vmax.f32 %v540, 0.0
  %v557 = vmax.f32 %v541, 0.0
  %v558 = vmax.f32 %v542, 0.0
  %v559 = vmax.f32 %v543, 0.0
  %v560 = vmax.f32 %v544, 0.0
  %v561 = vmax.f32 %v545, 0.0
  %v562 = vmax.f32 %v546, 0.0
  %v563 = vmax.f32 %v547, 0.0
  %v564 = vmax.f32 %v548, 0.0
  %v565 = vld [vmem:[%s2] sm:$0xff]
  %v566 = vld [vmem:[%s2 + $0x8] sm:$0xff]
  %v567 = vld [vmem:[%s2 + $0x10] sm:$0xff]
  %v568 = vld [vmem:[%s2 + $0x18] sm:$0xff]
  %v569 = vld [vmem:[%s2 + $0x20] sm:$0xff]
  %v570 = vld [vmem:[%s2 + $0x28] sm:$0xff]
  %v571 = vld [vmem:[%s2 + $0x30] sm:$0xff]
  %v572 = vld [vmem:[%s2 + $0x38] sm:$0xff]
  %v573 = vld [vmem:[%s2 + $0x40] sm:$0xff]
  %v574 = vld [vmem:[%s2 + $0x48] sm:$0xff]
  %v575 = vld [vmem:[%s2 + $0x50] sm:$0xff]
  %v576 = vld [vmem:[%s2 + $0x58] sm:$0xff]
  %v577 = vld [vmem:[%s2 + $0x60] sm:$0xff]
  %v578 = vld [vmem:[%s2 + $0x68] sm:$0xff]
  %v579 = vld [vmem:[%s2 + $0x70] sm:$0xff]
  %v580 = vld [vmem:[%s2 + $0x78] sm:$0xff]
  %581 = vset.pattern.permute.xlu0 1
  %582 = vperm.xlu0 %581, %v37
  %v583 = vpop.permute.xlu0 %582
  %585 = vset.pattern.permute.xlu0 1
  %586 = vperm.xlu0 %585, %v38
  %v587 = vpop.permute.xlu0 %586
  %589 = vset.pattern.permute.xlu0 1
  %590 = vperm.xlu0 %589, %v39
  %v591 = vpop.permute.xlu0 %590
  %593 = vset.pattern.permute.xlu0 1
  %594 = vperm.xlu0 %593, %v40
  %v595 = vpop.permute.xlu0 %594
  %597 = vset.pattern.permute.xlu0 1
  %598 = vperm.xlu0 %597, %v41
  %v599 = vpop.permute.xlu0 %598
  %601 = vset.pattern.permute.xlu0 1
  %602 = vperm.xlu0 %601, %v42
  %v603 = vpop.permute.xlu0 %602
  %605 = vset.pattern.permute.xlu0 1
  %606 = vperm.xlu0 %605, %v43
  %v607 = vpop.permute.xlu0 %606
  %609 = vset.pattern.permute.xlu0 1
  %610 = vperm.xlu0 %609, %v44
  %v611 = vpop.permute.xlu0 %610
  %613 = vset.pattern.permute.xlu0 1
  %614 = vperm.xlu0 %613, %v45
  %v615 = vpop.permute.xlu0 %614
  %617 = vset.pattern.permute.xlu0 1
  %618 = vperm.xlu0 %617, %v46
  %v619 = vpop.permute.xlu0 %618
  %621 = vset.pattern.permute.xlu0 1
  %622 = vperm.xlu0 %621, %v47
  %v623 = vpop.permute.xlu0 %622
  %625 = vset.pattern.permute.xlu0 1
  %626 = vperm.xlu0 %625, %v48
  %v627 = vpop.permute.xlu0 %626
  %629 = vset.pattern.permute.xlu0 1
  %630 = vperm.xlu0 %629, %v49
  %v631 = vpop.permute.xlu0 %630
  %633 = vset.pattern.permute.xlu0 1
  %634 = vperm.xlu0 %633, %v50
  %v635 = vpop.permute.xlu0 %634
  %637 = vset.pattern.permute.xlu0 1
  %638 = vperm.xlu0 %637, %v51
  %v639 = vpop.permute.xlu0 %638
  %641 = vset.pattern.permute.xlu0 1
  %642 = vperm.xlu0 %641, %v52
  %v643 = vpop.permute.xlu0 %642
  %645 = vmatprep.subr.mxu0 0.0
  %646 = vmatpush1.msra.mxu0 %v564
  %647 = vmatprep.subr.mxu0 0.0
  %648 = vmatpush1.msra.mxu0 %v563
  %649 = vmatprep.subr.mxu0 0.0
  %650 = vmatpush1.msra.mxu0 %v562
  %651 = vmatprep.subr.mxu0 0.0
  %652 = vmatpush1.msra.mxu0 %v561
  %653 = vmatprep.subr.mxu0 0.0
  %654 = vmatpush1.msra.mxu0 %v560
  %655 = vmatprep.subr.mxu0 0.0
  %656 = vmatpush1.msra.mxu0 %v559
  %657 = vmatprep.subr.mxu0 0.0
  %658 = vmatpush1.msra.mxu0 %v558
  %659 = vmatprep.subr.mxu0 0.0
  %660 = vmatpush1.msra.mxu0 %v557
  %661 = vmatprep.subr.mxu0 0.0
  %662 = vmatpush1.msra.mxu0 %v556
  %663 = vmatprep.subr.mxu0 0.0
  %664 = vmatpush1.msra.mxu0 %v555
  %665 = vmatprep.subr.mxu0 0.0
  %666 = vmatpush1.msra.mxu0 %v554
  %667 = vmatprep.subr.mxu0 0.0
  %668 = vmatpush1.msra.mxu0 %v553
  %669 = vmatprep.subr.mxu0 0.0
  %670 = vmatpush1.msra.mxu0 %v552
  %671 = vmatprep.subr.mxu0 0.0
  %672 = vmatpush1.msra.mxu0 %v551
  %673 = vmatprep.subr.mxu0 0.0
  %674 = vmatpush1.msra.mxu0 %v550
  %675 = vmatprep.subr.mxu0 0.0
  %676 = vmatpush1.msra.mxu0 %v549
  %677 = vmatprep.subr.mxu0 0.0
  %678 = vmatpush2.msra.mxu0 0.0
  %679 = vmatprep.subr.mxu0 0.0
  %680 = vmatpush2.msra.mxu0 0.0
  %681 = vmatprep.subr.mxu0 0.0
  %682 = vmatpush2.msra.mxu0 0.0
  %683 = vmatprep.subr.mxu0 0.0
  %684 = vmatpush2.msra.mxu0 0.0
  %685 = vmatprep.subr.mxu0 0.0
  %686 = vmatpush2.msra.mxu0 0.0
  %687 = vmatprep.subr.mxu0 0.0
  %688 = vmatpush2.msra.mxu0 0.0
  %689 = vmatprep.subr.mxu0 0.0
  %690 = vmatpush2.msra.mxu0 0.0
  %691 = vmatprep.subr.mxu0 0.0
  %692 = vmatpush2.msra.mxu0 0.0
  %693 = vmatprep.subr.mxu0 0.0
  %694 = vmatpush2.msra.mxu0 0.0
  %695 = vmatprep.subr.mxu0 0.0
  %696 = vmatpush2.msra.mxu0 0.0
  %697 = vmatprep.subr.mxu0 0.0
  %698 = vmatpush2.msra.mxu0 0.0
  %699 = vmatprep.subr.mxu0 0.0
  %700 = vmatpush2.msra.mxu0 0.0
  %701 = vmatprep.subr.mxu0 0.0
  %702 = vmatpush2.msra.mxu0 0.0
  %703 = vmatprep.subr.mxu0 0.0
  %704 = vmatpush2.msra.mxu0 0.0
  %705 = vmatprep.subr.mxu0 0.0
  %706 = vmatpush2.msra.mxu0 0.0
  %707 = vmatprep.subr.mxu0 0.0
  %708 = vmatpush2.msra.mxu0 0.0
  %709 = vmatprep.mubr.f32.mxu0 0.0
  %710 = vmatmul.mubr.f32.gmra.mxu0 %v565
  %v711 = vpop.f32.mrf.mxu0
  %v712 = vadd.f32 %v583, %v711
  %v713 = vpop.f32.mrf.mxu0
  %714 = vmatprep.mubr.f32.mxu0 0.0
  %715 = vmatmul.mubr.f32.gmra.mxu0 %v566
  %v716 = vpop.f32.mrf.mxu0
  %v717 = vadd.f32 %v587, %v716
  %v718 = vpop.f32.mrf.mxu0
  %719 = vmatprep.mubr.f32.mxu0 0.0
  %720 = vmatmul.mubr.f32.gmra.mxu0 %v567
  %v721 = vpop.f32.mrf.mxu0
  %v722 = vadd.f32 %v591, %v721
  %v723 = vpop.f32.mrf.mxu0
  %724 = vmatprep.mubr.f32.mxu0 0.0
  %725 = vmatmul.mubr.f32.gmra.mxu0 %v568
  %v726 = vpop.f32.mrf.mxu0
  %v727 = vadd.f32 %v595, %v726
  %v728 = vpop.f32.mrf.mxu0
  %729 = vmatprep.mubr.f32.mxu0 0.0
  %730 = vmatmul.mubr.f32.gmra.mxu0 %v569
  %v731 = vpop.f32.mrf.mxu0
  %v732 = vadd.f32 %v599, %v731
  %v733 = vpop.f32.mrf.mxu0
  %734 = vmatprep.mubr.f32.mxu0 0.0
  %735 = vmatmul.mubr.f32.gmra.mxu0 %v570
  %v736 = vpop.f32.mrf.mxu0
  %v737 = vadd.f32 %v603, %v736
  %v738 = vpop.f32.mrf.mxu0
  %739 = vmatprep.mubr.f32.mxu0 0.0
  %740 = vmatmul.mubr.f32.gmra.mxu0 %v571
  %v741 = vpop.f32.mrf.mxu0
  %v742 = vadd.f32 %v607, %v741
  %v743 = vpop.f32.mrf.mxu0
  %744 = vmatprep.mubr.f32.mxu0 0.0
  %745 = vmatmul.mubr.f32.gmra.mxu0 %v572
  %v746 = vpop.f32.mrf.mxu0
  %v747 = vadd.f32 %v611, %v746
  %v748 = vpop.f32.mrf.mxu0
  %749 = vmatprep.mubr.f32.mxu0 0.0
  %750 = vmatmul.mubr.f32.gmra.mxu0 %v573
  %v751 = vpop.f32.mrf.mxu0
  %v752 = vadd.f32 %v615, %v751
  %v753 = vpop.f32.mrf.mxu0
  %754 = vmatprep.mubr.f32.mxu0 0.0
  %755 = vmatmul.mubr.f32.gmra.mxu0 %v574
  %v756 = vpop.f32.mrf.mxu0
  %v757 = vadd.f32 %v619, %v756
  %v758 = vpop.f32.mrf.mxu0
  %759 = vmatprep.mubr.f32.mxu0 0.0
  %760 = vmatmul.mubr.f32.gmra.mxu0 %v575
  %v761 = vpop.f32.mrf.mxu0
  %v762 = vadd.f32 %v623, %v761
  %v763 = vpop.f32.mrf.mxu0
  %764 = vmatprep.mubr.f32.mxu0 0.0
  %765 = vmatmul.mubr.f32.gmra.mxu0 %v576
  %v766 = vpop.f32.mrf.mxu0
  %v767 = vadd.f32 %v627, %v766
  %v768 = vpop.f32.mrf.mxu0
  %769 = vmatprep.mubr.f32.mxu0 0.0
  %770 = vmatmul.mubr.f32.gmra.mxu0 %v577
  %v771 = vpop.f32.mrf.mxu0
  %v772 = vadd.f32 %v631, %v771
  %v773 = vpop.f32.mrf.mxu0
  %774 = vmatprep.mubr.f32.mxu0 0.0
  %775 = vmatmul.mubr.f32.gmra.mxu0 %v578
  %v776 = vpop.f32.mrf.mxu0
  %v777 = vadd.f32 %v635, %v776
  %v778 = vpop.f32.mrf.mxu0
  %779 = vmatprep.mubr.f32.mxu0 0.0
  %780 = vmatmul.mubr.f32.gmra.mxu0 %v579
  %v781 = vpop.f32.mrf.mxu0
  %v782 = vadd.f32 %v639, %v781
  %v783 = vpop.f32.mrf.mxu0
  %784 = vmatprep.mubr.f32.mxu0 0.0
  %785 = vmatmul.mubr.f32.gmra.mxu0 %v580
  %v786 = vpop.f32.mrf.mxu0
  %v787 = vadd.f32 %v643, %v786
  %v788 = vpop.f32.mrf.mxu0
  %789 = vdwg.mxu0
  %v790 = vmax.f32 %v712, 0.0
  %v791 = vmax.f32 %v717, 0.0
  %v792 = vmax.f32 %v722, 0.0
  %v793 = vmax.f32 %v727, 0.0
  %v794 = vmax.f32 %v732, 0.0
  %v795 = vmax.f32 %v737, 0.0
  %v796 = vmax.f32 %v742, 0.0
  %v797 = vmax.f32 %v747, 0.0
  %v798 = vmax.f32 %v752, 0.0
  %v799 = vmax.f32 %v757, 0.0
  %v800 = vmax.f32 %v762, 0.0
  %v801 = vmax.f32 %v767, 0.0
  %v802 = vmax.f32 %v772, 0.0
  %v803 = vmax.f32 %v777, 0.0
  %v804 = vmax.f32 %v782, 0.0
  %v805 = vmax.f32 %v787, 0.0
  %v806 = vld [vmem:[%s3] sm:$0xff]
  %807 = vset.pattern.permute.xlu0 2
  %808 = vperm.xlu0 %807, %v37
  %v809 = vpop.permute.xlu0 %808
  %811 = vmatprep.subr.mxu0 0.0
  %812 = vmatpush1.msra.mxu0 %v805
  %813 = vmatprep.subr.mxu0 0.0
  %814 = vmatpush1.msra.mxu0 %v804
  %815 = vmatprep.subr.mxu0 0.0
  %816 = vmatpush1.msra.mxu0 %v803
  %817 = vmatprep.subr.mxu0 0.0
  %818 = vmatpush1.msra.mxu0 %v802
  %819 = vmatprep.subr.mxu0 0.0
  %820 = vmatpush1.msra.mxu0 %v801
  %821 = vmatprep.subr.mxu0 0.0
  %822 = vmatpush1.msra.mxu0 %v800
  %823 = vmatprep.subr.mxu0 0.0
  %824 = vmatpush1.msra.mxu0 %v799
  %825 = vmatprep.subr.mxu0 0.0
  %826 = vmatpush1.msra.mxu0 %v798
  %827 = vmatprep.subr.mxu0 0.0
  %828 = vmatpush1.msra.mxu0 %v797
  %829 = vmatprep.subr.mxu0 0.0
  %830 = vmatpush1.msra.mxu0 %v796
  %831 = vmatprep.subr.mxu0 0.0
  %832 = vmatpush1.msra.mxu0 %v795
  %833 = vmatprep.subr.mxu0 0.0
  %834 = vmatpush1.msra.mxu0 %v794
  %835 = vmatprep.subr.mxu0 0.0
  %836 = vmatpush1.msra.mxu0 %v793
  %837 = vmatprep.subr.mxu0 0.0
  %838 = vmatpush1.msra.mxu0 %v792
  %839 = vmatprep.subr.mxu0 0.0
  %840 = vmatpush1.msra.mxu0 %v791
  %841 = vmatprep.subr.mxu0 0.0
  %842 = vmatpush1.msra.mxu0 %v790
  %843 = vmatprep.subr.mxu0 0.0
  %844 = vmatpush2.msra.mxu0 0.0
  %845 = vmatprep.subr.mxu0 0.0
  %846 = vmatpush2.msra.mxu0 0.0
  %847 = vmatprep.subr.mxu0 0.0
  %848 = vmatpush2.msra.mxu0 0.0
  %849 = vmatprep.subr.mxu0 0.0
  %850 = vmatpush2.msra.mxu0 0.0
  %851 = vmatprep.subr.mxu0 0.0
  %852 = vmatpush2.msra.mxu0 0.0
  %853 = vmatprep.subr.mxu0 0.0
  %854 = vmatpush2.msra.mxu0 0.0
  %855 = vmatprep.subr.mxu0 0.0
  %856 = vmatpush2.msra.mxu0 0.0
  %857 = vmatprep.subr.mxu0 0.0
  %858 = vmatpush2.msra.mxu0 0.0
  %859 = vmatprep.subr.mxu0 0.0
  %860 = vmatpush2.msra.mxu0 0.0
  %861 = vmatprep.subr.mxu0 0.0
  %862 = vmatpush2.msra.mxu0 0.0
  %863 = vmatprep.subr.mxu0 0.0
  %864 = vmatpush2.msra.mxu0 0.0
  %865 = vmatprep.subr.mxu0 0.0
  %866 = vmatpush2.msra.mxu0 0.0
  %867 = vmatprep.subr.mxu0 0.0
  %868 = vmatpush2.msra.mxu0 0.0
  %869 = vmatprep.subr.mxu0 0.0
  %870 = vmatpush2.msra.mxu0 0.0
  %871 = vmatprep.subr.mxu0 0.0
  %872 = vmatpush2.msra.mxu0 0.0
  %873 = vmatprep.subr.mxu0 0.0
  %874 = vmatpush2.msra.mxu0 0.0
  %875 = vmatprep.mubr.f32.mxu0 0.0
  %876 = vmatmul.mubr.f32.gmra.mxu0 %v806
  %v877 = vpop.f32.mrf.mxu0
  %v878 = vadd.f32 %v809, %v877
  %v879 = vpop.f32.mrf.mxu0
  %880 = vdwg.mxu0
  %v881 = vrot.slane %v878, 4
  %v882 = vmax.f32 %v878, %v881
  %v883 = vrot.slane %v882, 2
  %v884 = vmax.f32 %v882, %v883
  %v885 = vrot.slane %v884, 1
  %v886 = vmax.f32 %v884, %v885
  %v887 = vsub.f32 %v878, %v886
  %v888 = vmul.f32 %v887, 1.442695
  %v889 = vpow.pop %v888
  %v890 = vrot.slane %v889, 4
  %v891 = vadd.f32 %v889, %v890
  %v892 = vrot.slane %v891, 2
  %v893 = vadd.f32 %v891, %v892
  %v894 = vrot.slane %v893, 1
  %v895 = vadd.f32 %v893, %v894
  %v896 = vrcp.pop %v895
  %v897 = vmul.f32 1.0, %v896
  %v898 = vmul.f32 %v889, %v897
  %899 = vst [vmem:[%s5] sm:$0xff] %v898
  // Predicated region
  $region22: #{iris_mlp_forward.1} parent=0 // pred_check
    _
  $region23: #{iris_mlp_forward.1} parent=0 // pred_check_branch
    %901 = sbr.rel (0) target = $region25
  $region24: #{iris_mlp_forward.1} parent=0 // pred_region
    _
  $region25: #{iris_mlp_forward.1} parent=0 // pred_fallthru
    _
  // Predicated region
  $region26: #{iris_mlp_forward.1} parent=0 // pred_check
    _
  $region27: #{iris_mlp_forward.1} parent=0 // pred_check_branch
    %903 = sbr.rel (0) target = $region29
  $region28: #{iris_mlp_forward.1} parent=0 // pred_region
    _
  $region29: #{iris_mlp_forward.1} parent=0 // pred_fallthru
    _

</llo_original>
